<compile_context>
chip_gen: v7x
topology: tpu7x:2x2x1
jax: 0.10.0
libtpu: 0.0.40
codegen_flags: <defaults>
</compile_context>

<pallas_src>
import math

import jax
import jax.numpy as jnp
from jax.experimental import pallas as pl
from jax.experimental.pallas import tpu as pltpu


def _round_up(x, m):
    return ((x + m - 1) // m) * m


# ----------------------------- Pallas kernel --------------------------------
def _weight_reward_kernel(x_ref, w1_ref, b1_ref, w2_ref, b2_ref,
                          w3_ref, b3_ref, out_ref):
    """Fused (Linear -> ReLU -> Linear -> ReLU -> Linear -> tanh) for the whole
    ensemble.  x tile is loaded (and cast to bf16) once and reused by every
    member; all member weights are VMEM-resident across the batch grid."""
    f32, bf16 = jnp.float32, jnp.bfloat16
    num_members = out_ref.shape[0]

    xb = x_ref[...].astype(bf16)                       # (bt, in_pad), read once

    for m in range(num_members):                       # static unroll, M is small
        h1 = jnp.dot(xb, w1_ref[m], preferred_element_type=f32)
        h1 = jnp.maximum(h1 + b1_ref[m], 0.0)          # ReLU (f32)
        h2 = jnp.dot(h1.astype(bf16), w2_ref[m], preferred_element_type=f32)
        h2 = jnp.maximum(h2 + b2_ref[m], 0.0)          # ReLU (f32)
        y = jnp.dot(h2.astype(bf16), w3_ref[m], preferred_element_type=f32)
        out_ref[m] = jnp.tanh(y + b3_ref[m])           # torch.tanh(weights)


def _run_mlp_tanh(x, w1, b1, w2, b2, w3, b3, num_reward_terms):
    """One gridded pallas_call over batch tiles; ensemble handled in-kernel."""
    B, in_dim = x.shape
    M, in_pad, h_pad = w1.shape
    out_sub = w3.shape[-1]

    # Batch tiling: one tile for B <= 2048, else 2048-row tiles.  Per-tile
    # working set at bt=2048 is ~8 MiB double-buffered -> fits every gen.
    if B <= 2048:
        bt = _round_up(B, 8)
        b_pad = bt
    else:
        bt = 2048
        b_pad = _round_up(B, bt)

    pad_rows, pad_cols = b_pad - B, in_pad - in_dim
    if pad_rows or pad_cols:
        # single fused pad (combines with the wrapper concat), not per-segment
        x = jnp.pad(x, ((0, pad_rows), (0, pad_cols)))

    grid = (b_pad // bt,)

    in_specs = [
        pl.BlockSpec((bt, in_pad), lambda b: (b, 0)),            # x: tiled over batch
        pl.BlockSpec((M, in_pad, h_pad), lambda b: (0, 0, 0)),   # w1: resident
        pl.BlockSpec((M, 1, h_pad), lambda b: (0, 0, 0)),        # b1
        pl.BlockSpec((M, h_pad, h_pad), lambda b: (0, 0, 0)),    # w2
        pl.BlockSpec((M, 1, h_pad), lambda b: (0, 0, 0)),        # b2
        pl.BlockSpec((M, h_pad, out_sub), lambda b: (0, 0, 0)),  # w3
        pl.BlockSpec((M, 1, out_sub), lambda b: (0, 0, 0)),      # b3
    ]
    # narrow (8-wide, full-dim) output: 32 B/row/member writeback instead of 512
    out_specs = pl.BlockSpec((M, bt, out_sub), lambda b: (0, b, 0))

    flops = 2 * M * b_pad * (in_pad * h_pad + h_pad * h_pad + h_pad * out_sub)
    bytes_accessed = (
        b_pad * in_pad * 4                                               # x read once
        + M * (in_pad * h_pad + h_pad * h_pad + h_pad * out_sub) * 2     # bf16 weights
        + M * (2 * h_pad + out_sub) * 4                                  # f32 biases
        + M * b_pad * out_sub * 4)                                       # padded output
    cost = pl.CostEstimate(flops=int(flops),
                           transcendentals=int(M * b_pad * out_sub),
                           bytes_accessed=int(bytes_accessed))

    out = pl.pallas_call(
        _weight_reward_kernel,
        out_shape=jax.ShapeDtypeStruct((M, b_pad, out_sub), jnp.float32),
        grid_spec=pltpu.PrefetchScalarGridSpec(
            num_scalar_prefetch=0,
            grid=grid,
            in_specs=in_specs,
            out_specs=out_specs),
        compiler_params=pltpu.CompilerParams(
            dimension_semantics=("parallel",),
            vmem_limit_bytes=32 * 1024 * 1024),
        cost_estimate=cost,
    )(x, w1, b1, w2, b2, w3, b3)

    # Padded lanes are tanh(b3_pad)=tanh(0)=0 only while b3 pad stays zero; we
    # never rely on that — padded rows/lanes are always sliced off here.
    return out[:, :B, :num_reward_terms]


# ------------------------- WeightRewardModel (JAX) --------------------------
class WeightRewardModel:
    MIN = -1.0
    MAX = 1.0

    _SEG_ORDER = ("low_dim_obs", "fused_view_feats", "action", "time_obs")

    def __init__(self, key, segment_dims, hidden_dim, num_reward_terms,
                 num_reward_models=1, reward_lows=None, reward_highs=None,
                 reg_weight=0.0):
        # segment_dims: {name -> flattened feature dim} for the segments this
        # FullyConnectedModule was built with (concat order = _SEG_ORDER).
        self.segment_names = [n for n in self._SEG_ORDER if n in segment_dims]
        self.segment_dims = [int(segment_dims[n]) for n in self.segment_names]
        in_dim = sum(self.segment_dims)
        self.in_dim = in_dim
        self.hidden_dim = hidden_dim
        self.num_reward_terms = num_reward_terms
        self.num_reward_models = num_reward_models
        self.reg_weight = reg_weight
        self.label_margin = 0.0
        self.label_target = 1.0 - 2 * self.label_margin
        if reward_lows is None:
            reward_lows = jnp.full((num_reward_terms,), -jnp.inf)
        if reward_highs is None:
            reward_highs = jnp.full((num_reward_terms,), jnp.inf)
        self.reward_lows = reward_lows
        self.reward_highs = reward_highs

        in_pad = _round_up(in_dim, 8)            # sublane-aligned K for layer 1
        h_pad = _round_up(hidden_dim, 8)         # NOT lane-padded (stays in VMEM)
        out_sub = _round_up(num_reward_terms, 8)  # narrow full-dim output lanes
        self._in_pad, self._h_pad, self._out_sub = in_pad, h_pad, out_sub

        # Deterministic parameter init (stand-in for utils.weight_init),
        # stacked across ensemble members and zero-padded.
        w1s, b1s, w2s, b2s, w3s, b3s = [], [], [], [], [], []
        for m in range(num_reward_models):
            k = jax.random.fold_in(key, m)
            k1, k2, k3 = jax.random.split(k, 3)
            scale1 = 1.0 / math.sqrt(in_dim)
            scale2 = 1.0 / math.sqrt(hidden_dim)
            w1 = jax.random.normal(k1, (in_dim, hidden_dim), jnp.float32) * scale1
            w2 = jax.random.normal(k2, (hidden_dim, hidden_dim), jnp.float32) * scale2
            w3 = jax.random.normal(k3, (hidden_dim, num_reward_terms), jnp.float32) * scale2
            w1 = jnp.pad(w1, ((0, in_pad - in_dim), (0, h_pad - hidden_dim)))
            w2 = jnp.pad(w2, ((0, h_pad - hidden_dim), (0, h_pad - hidden_dim)))
            w3 = jnp.pad(w3, ((0, h_pad - hidden_dim), (0, out_sub - num_reward_terms)))
            w1s.append(w1.astype(jnp.bfloat16))
            w2s.append(w2.astype(jnp.bfloat16))
            w3s.append(w3.astype(jnp.bfloat16))
            b1s.append(jnp.zeros((1, h_pad), jnp.float32))
            b2s.append(jnp.zeros((1, h_pad), jnp.float32))
            b3s.append(jnp.zeros((1, out_sub), jnp.float32))

        self.w1 = jnp.stack(w1s)     # (M, in_pad, h_pad)   bf16
        self.b1 = jnp.stack(b1s)     # (M, 1, h_pad)        f32
        self.w2 = jnp.stack(w2s)     # (M, h_pad, h_pad)    bf16
        self.b2 = jnp.stack(b2s)     # (M, 1, h_pad)        f32
        self.w3 = jnp.stack(w3s)     # (M, h_pad, out_sub)  bf16
        self.b3 = jnp.stack(b3s)     # (M, 1, out_sub)      f32

    def _gather_segments(self, low_dim_obs, fused_view_feats, action, time_obs):
        B = action.shape[0]
        provided = {
            "low_dim_obs": low_dim_obs,
            "fused_view_feats": fused_view_feats,
            "action": action,
            "time_obs": time_obs,
        }
        xs = []
        for name, d in zip(self.segment_names, self.segment_dims):
            v = provided[name]
            assert v is not None, f"segment {name} expected by this model"
            v = v.reshape(B, -1).astype(jnp.float32)
            assert v.shape[1] == d, (name, v.shape, d)
            xs.append(v)
        return xs

    def forward_all(self, low_dim_obs, fused_view_feats, action, time_obs):
        """All ensemble members in one pallas_call -> (M, B, num_reward_terms)."""
        xs = self._gather_segments(low_dim_obs, fused_view_feats, action, time_obs)
        x = jnp.concatenate(xs, axis=-1)          # one fused copy; pad folds in
        return _run_mlp_tanh(x, self.w1, self.b1, self.w2, self.b2,
                             self.w3, self.b3, self.num_reward_terms)

    def forward(self, low_dim_obs, fused_view_feats, action, time_obs, member=0):
        # The ensemble is evaluated in one launch (activations streamed once);
        # select the requested member's output.
        return self.forward_all(low_dim_obs, fused_view_feats, action, time_obs)[member]

    def transform_to_tanh(self, weights):
        # NOTE: matches torch semantics — with the default +/-inf bounds this
        # produces inf/NaN; callers must supply finite reward_lows/highs.
        scale = (self.reward_highs - self.reward_lows) / (self.MAX - self.MIN)
        return (self.reward_lows + scale * (weights - self.MIN)).astype(weights.dtype)

    # TODO(synk): calculate_loss / reset / set_eval_env_running are host-side
    # training-loop utilities, not part of the forward hot path; not ported.


# --------------------------------- main --------------------------------------
if __name__ == "__main__":
    key = jax.random.PRNGKey(0)
    k_p, k_lo, k_fv, k_ac, k_t = jax.random.split(key, 5)

    B = 8
    low_dim = 16
    fused_dim = 32
    act_shape = (B, 2, 4)   # flattened to 8
    time_dim = 4
    hidden = 64
    num_reward_terms = 3
    num_members = 2

    segment_dims = {"low_dim_obs": low_dim, "fused_view_feats": fused_dim,
                    "action": act_shape[1] * act_shape[2], "time_obs": time_dim}

    model = WeightRewardModel(k_p, segment_dims, hidden_dim=hidden,
                              num_reward_terms=num_reward_terms,
                              num_reward_models=num_members, reg_weight=0.1)

    low_dim_obs = jax.random.normal(k_lo, (B, low_dim), jnp.float32)
    fused_view_feats = jax.random.normal(k_fv, (B, fused_dim), jnp.float32)
    action = jax.random.normal(k_ac, act_shape, jnp.float32)
    time_obs = jax.random.normal(k_t, (B, time_dim), jnp.float32)

    # full ensemble in one launch
    all_w = model.forward_all(low_dim_obs, fused_view_feats, action, time_obs)
    all_w = jax.block_until_ready(all_w)
    assert all_w.shape == (num_members, B, num_reward_terms)

    weights = model.forward(low_dim_obs, fused_view_feats, action, time_obs, member=0)
    weights = jax.block_until_ready(weights)

    assert weights.shape == (B, num_reward_terms)
    assert bool(jnp.all(jnp.isfinite(weights)))
    assert bool(jnp.all(jnp.abs(weights) <= 1.0))  # tanh range

    # plain-JAX reference (same bf16 weights, f32 math) for member 0
    xs = model._gather_segments(low_dim_obs, fused_view_feats, action, time_obs)
    x_cat = jnp.concatenate(xs, axis=-1)
    in_dim = model.in_dim
    w1f = model.w1[0, :in_dim, :hidden].astype(jnp.float32)
    w2f = model.w2[0, :hidden, :hidden].astype(jnp.float32)
    w3f = model.w3[0, :hidden, :num_reward_terms].astype(jnp.float32)
    b1f = model.b1[0, 0, :hidden]
    b2f = model.b2[0, 0, :hidden]
    b3f = model.b3[0, 0, :num_reward_terms]
    h1 = jnp.maximum(x_cat @ w1f + b1f, 0.0)
    h2 = jnp.maximum(h1 @ w2f + b2f, 0.0)
    ref = jnp.tanh(h2 @ w3f + b3f)
    assert bool(jnp.max(jnp.abs(ref - weights)) < 5e-2)

    print("KERNEL_OK")
</pallas_src>

<mosaic_0001>
module attributes {stable_mosaic.version = 11 : i64} {
  func.func @_weight_reward_kernel(%arg0: i32, %arg1: memref<8x64xf32, #tpu.memory_space<vmem>>, %arg2: memref<2x64x64xbf16, #tpu.memory_space<vmem>>, %arg3: memref<2x1x64xf32, #tpu.memory_space<vmem>>, %arg4: memref<2x64x64xbf16, #tpu.memory_space<vmem>>, %arg5: memref<2x1x64xf32, #tpu.memory_space<vmem>>, %arg6: memref<2x64x8xbf16, #tpu.memory_space<vmem>>, %arg7: memref<2x1x8xf32, #tpu.memory_space<vmem>>, %arg8: memref<2x8x8xf32, #tpu.memory_space<vmem>>) attributes {dimension_semantics = [#tpu.dimension_semantics<parallel>], iteration_bounds = array<i64: 1>, scalar_prefetch = 0 : i64, scratch_operands = 0 : i64, tpu.core_type = #tpu.core_type<tc>, window_params = [{transform_indices = @transform_0, window_bounds = array<i64: 8, 64>}, {pipeline_mode = #tpu.pipeline_mode<synchronous>, transform_indices = @transform_1, window_bounds = array<i64: 2, 64, 64>}, {pipeline_mode = #tpu.pipeline_mode<synchronous>, transform_indices = @transform_2, window_bounds = array<i64: 2, 1, 64>}, {pipeline_mode = #tpu.pipeline_mode<synchronous>, transform_indices = @transform_3, window_bounds = array<i64: 2, 64, 64>}, {pipeline_mode = #tpu.pipeline_mode<synchronous>, transform_indices = @transform_4, window_bounds = array<i64: 2, 1, 64>}, {pipeline_mode = #tpu.pipeline_mode<synchronous>, transform_indices = @transform_5, window_bounds = array<i64: 2, 64, 8>}, {pipeline_mode = #tpu.pipeline_mode<synchronous>, transform_indices = @transform_6, window_bounds = array<i64: 2, 1, 8>}, {transform_indices = @transform_7, window_bounds = array<i64: 2, 8, 8>}]} {
    %c0 = arith.constant 0 : index
    %c0_0 = arith.constant 0 : index
    %0 = vector.load %arg1[%c0, %c0_0] : memref<8x64xf32, #tpu.memory_space<vmem>>, vector<8x64xf32>
    %1 = arith.truncf %0 : vector<8x64xf32> to vector<8x64xbf16>
    %c0_1 = arith.constant 0 : index
    %c0_2 = arith.constant 0 : index
    %c0_3 = arith.constant 0 : index
    %2 = vector.load %arg2[%c0_1, %c0_2, %c0_3] : memref<2x64x64xbf16, #tpu.memory_space<vmem>>, vector<1x64x64xbf16>
    %3 = vector.shape_cast %2 : vector<1x64x64xbf16> to vector<64x64xbf16>
    %cst = arith.constant dense<0.000000e+00> : vector<8x64xf32>
    %4 = tpu.matmul %1, %3, %cst {dimension_numbers = #tpu.dot_dimension_numbers<[1], [0], [0], [1], [0, 0, 1, 1], [], []>} : vector<8x64xbf16>, vector<64x64xbf16>, vector<8x64xf32> -> vector<8x64xf32>
    %c0_4 = arith.constant 0 : index
    %c0_5 = arith.constant 0 : index
    %c0_6 = arith.constant 0 : index
    %5 = vector.load %arg3[%c0_4, %c0_5, %c0_6] : memref<2x1x64xf32, #tpu.memory_space<vmem>>, vector<1x1x64xf32>
    %6 = vector.shape_cast %5 : vector<1x1x64xf32> to vector<1x64xf32>
    %7 = vector.broadcast %6 : vector<1x64xf32> to vector<8x64xf32>
    %8 = arith.addf %4, %7 : vector<8x64xf32>
    %cst_7 = arith.constant 0.000000e+00 : f32
    %9 = vector.broadcast %cst_7 : f32 to vector<8x64xf32>
    %10 = arith.maximumf %8, %9 : vector<8x64xf32>
    %11 = arith.truncf %10 : vector<8x64xf32> to vector<8x64xbf16>
    %c0_8 = arith.constant 0 : index
    %c0_9 = arith.constant 0 : index
    %c0_10 = arith.constant 0 : index
    %12 = vector.load %arg4[%c0_8, %c0_9, %c0_10] : memref<2x64x64xbf16, #tpu.memory_space<vmem>>, vector<1x64x64xbf16>
    %13 = vector.shape_cast %12 : vector<1x64x64xbf16> to vector<64x64xbf16>
    %cst_11 = arith.constant dense<0.000000e+00> : vector<8x64xf32>
    %14 = tpu.matmul %11, %13, %cst_11 {dimension_numbers = #tpu.dot_dimension_numbers<[1], [0], [0], [1], [0, 0, 1, 1], [], []>} : vector<8x64xbf16>, vector<64x64xbf16>, vector<8x64xf32> -> vector<8x64xf32>
    %c0_12 = arith.constant 0 : index
    %c0_13 = arith.constant 0 : index
    %c0_14 = arith.constant 0 : index
    %15 = vector.load %arg5[%c0_12, %c0_13, %c0_14] : memref<2x1x64xf32, #tpu.memory_space<vmem>>, vector<1x1x64xf32>
    %16 = vector.shape_cast %15 : vector<1x1x64xf32> to vector<1x64xf32>
    %17 = vector.broadcast %16 : vector<1x64xf32> to vector<8x64xf32>
    %18 = arith.addf %14, %17 : vector<8x64xf32>
    %cst_15 = arith.constant 0.000000e+00 : f32
    %19 = vector.broadcast %cst_15 : f32 to vector<8x64xf32>
    %20 = arith.maximumf %18, %19 : vector<8x64xf32>
    %21 = arith.truncf %20 : vector<8x64xf32> to vector<8x64xbf16>
    %c0_16 = arith.constant 0 : index
    %c0_17 = arith.constant 0 : index
    %c0_18 = arith.constant 0 : index
    %22 = vector.load %arg6[%c0_16, %c0_17, %c0_18] : memref<2x64x8xbf16, #tpu.memory_space<vmem>>, vector<1x64x8xbf16>
    %23 = vector.shape_cast %22 : vector<1x64x8xbf16> to vector<64x8xbf16>
    %cst_19 = arith.constant dense<0.000000e+00> : vector<8x8xf32>
    %24 = tpu.matmul %21, %23, %cst_19 {dimension_numbers = #tpu.dot_dimension_numbers<[1], [0], [0], [1], [0, 0, 1, 1], [], []>} : vector<8x64xbf16>, vector<64x8xbf16>, vector<8x8xf32> -> vector<8x8xf32>
    %c0_20 = arith.constant 0 : index
    %c0_21 = arith.constant 0 : index
    %c0_22 = arith.constant 0 : index
    %25 = vector.load %arg7[%c0_20, %c0_21, %c0_22] : memref<2x1x8xf32, #tpu.memory_space<vmem>>, vector<1x1x8xf32>
    %26 = vector.shape_cast %25 : vector<1x1x8xf32> to vector<1x8xf32>
    %27 = vector.broadcast %26 : vector<1x8xf32> to vector<8x8xf32>
    %28 = arith.addf %24, %27 : vector<8x8xf32>
    %29 = math.tanh %28 : vector<8x8xf32>
    %c0_23 = arith.constant 0 : index
    %c0_24 = arith.constant 0 : index
    %c0_25 = arith.constant 0 : index
    %30 = vector.load %arg8[%c0_23, %c0_24, %c0_25] : memref<2x8x8xf32, #tpu.memory_space<vmem>>, vector<1x8x8xf32>
    %31 = vector.shape_cast %30 : vector<1x8x8xf32> to vector<8x8xf32>
    %32 = vector.shape_cast %29 : vector<8x8xf32> to vector<1x8x8xf32>
    tpu.vector_store %arg8[%c0_23, %c0_24, %c0_25], %32 {strides = array<i32>} : memref<2x8x8xf32, #tpu.memory_space<vmem>>, vector<1x8x8xf32>,
    %c1 = arith.constant 1 : index
    %c0_26 = arith.constant 0 : index
    %c0_27 = arith.constant 0 : index
    %33 = vector.load %arg2[%c1, %c0_26, %c0_27] : memref<2x64x64xbf16, #tpu.memory_space<vmem>>, vector<1x64x64xbf16>
    %34 = vector.shape_cast %33 : vector<1x64x64xbf16> to vector<64x64xbf16>
    %cst_28 = arith.constant dense<0.000000e+00> : vector<8x64xf32>
    %35 = tpu.matmul %1, %34, %cst_28 {dimension_numbers = #tpu.dot_dimension_numbers<[1], [0], [0], [1], [0, 0, 1, 1], [], []>} : vector<8x64xbf16>, vector<64x64xbf16>, vector<8x64xf32> -> vector<8x64xf32>
    %c1_29 = arith.constant 1 : index
    %c0_30 = arith.constant 0 : index
    %c0_31 = arith.constant 0 : index
    %36 = vector.load %arg3[%c1_29, %c0_30, %c0_31] : memref<2x1x64xf32, #tpu.memory_space<vmem>>, vector<1x1x64xf32>
    %37 = vector.shape_cast %36 : vector<1x1x64xf32> to vector<1x64xf32>
    %38 = vector.broadcast %37 : vector<1x64xf32> to vector<8x64xf32>
    %39 = arith.addf %35, %38 : vector<8x64xf32>
    %cst_32 = arith.constant 0.000000e+00 : f32
    %40 = vector.broadcast %cst_32 : f32 to vector<8x64xf32>
    %41 = arith.maximumf %39, %40 : vector<8x64xf32>
    %42 = arith.truncf %41 : vector<8x64xf32> to vector<8x64xbf16>
    %c1_33 = arith.constant 1 : index
    %c0_34 = arith.constant 0 : index
    %c0_35 = arith.constant 0 : index
    %43 = vector.load %arg4[%c1_33, %c0_34, %c0_35] : memref<2x64x64xbf16, #tpu.memory_space<vmem>>, vector<1x64x64xbf16>
    %44 = vector.shape_cast %43 : vector<1x64x64xbf16> to vector<64x64xbf16>
    %cst_36 = arith.constant dense<0.000000e+00> : vector<8x64xf32>
    %45 = tpu.matmul %42, %44, %cst_36 {dimension_numbers = #tpu.dot_dimension_numbers<[1], [0], [0], [1], [0, 0, 1, 1], [], []>} : vector<8x64xbf16>, vector<64x64xbf16>, vector<8x64xf32> -> vector<8x64xf32>
    %c1_37 = arith.constant 1 : index
    %c0_38 = arith.constant 0 : index
    %c0_39 = arith.constant 0 : index
    %46 = vector.load %arg5[%c1_37, %c0_38, %c0_39] : memref<2x1x64xf32, #tpu.memory_space<vmem>>, vector<1x1x64xf32>
    %47 = vector.shape_cast %46 : vector<1x1x64xf32> to vector<1x64xf32>
    %48 = vector.broadcast %47 : vector<1x64xf32> to vector<8x64xf32>
    %49 = arith.addf %45, %48 : vector<8x64xf32>
    %cst_40 = arith.constant 0.000000e+00 : f32
    %50 = vector.broadcast %cst_40 : f32 to vector<8x64xf32>
    %51 = arith.maximumf %49, %50 : vector<8x64xf32>
    %52 = arith.truncf %51 : vector<8x64xf32> to vector<8x64xbf16>
    %c1_41 = arith.constant 1 : index
    %c0_42 = arith.constant 0 : index
    %c0_43 = arith.constant 0 : index
    %53 = vector.load %arg6[%c1_41, %c0_42, %c0_43] : memref<2x64x8xbf16, #tpu.memory_space<vmem>>, vector<1x64x8xbf16>
    %54 = vector.shape_cast %53 : vector<1x64x8xbf16> to vector<64x8xbf16>
    %cst_44 = arith.constant dense<0.000000e+00> : vector<8x8xf32>
    %55 = tpu.matmul %52, %54, %cst_44 {dimension_numbers = #tpu.dot_dimension_numbers<[1], [0], [0], [1], [0, 0, 1, 1], [], []>} : vector<8x64xbf16>, vector<64x8xbf16>, vector<8x8xf32> -> vector<8x8xf32>
    %c1_45 = arith.constant 1 : index
    %c0_46 = arith.constant 0 : index
    %c0_47 = arith.constant 0 : index
    %56 = vector.load %arg7[%c1_45, %c0_46, %c0_47] : memref<2x1x8xf32, #tpu.memory_space<vmem>>, vector<1x1x8xf32>
    %57 = vector.shape_cast %56 : vector<1x1x8xf32> to vector<1x8xf32>
    %58 = vector.broadcast %57 : vector<1x8xf32> to vector<8x8xf32>
    %59 = arith.addf %55, %58 : vector<8x8xf32>
    %60 = math.tanh %59 : vector<8x8xf32>
    %c1_48 = arith.constant 1 : index
    %c0_49 = arith.constant 0 : index
    %c0_50 = arith.constant 0 : index
    %61 = vector.load %arg8[%c1_48, %c0_49, %c0_50] : memref<2x8x8xf32, #tpu.memory_space<vmem>>, vector<1x8x8xf32>
    %62 = vector.shape_cast %61 : vector<1x8x8xf32> to vector<8x8xf32>
    %63 = vector.shape_cast %60 : vector<8x8xf32> to vector<1x8x8xf32>
    tpu.vector_store %arg8[%c1_48, %c0_49, %c0_50], %63 {strides = array<i32>} : memref<2x8x8xf32, #tpu.memory_space<vmem>>, vector<1x8x8xf32>,
    return
  }
  func.func @transform_0(%arg0: i32) -> (i32, i32) {
    %c0_i32 = arith.constant 0 : i32
    %c0_i32_0 = arith.constant 0 : i32
    return %arg0, %c0_i32 : i32, i32
  }
  func.func @transform_1(%arg0: i32) -> (i32, i32, i32) {
    %c0_i32 = arith.constant 0 : i32
    %c0_i32_0 = arith.constant 0 : i32
    %c0_i32_1 = arith.constant 0 : i32
    %c0_i32_2 = arith.constant 0 : i32
    return %c0_i32, %c0_i32_0, %c0_i32_1 : i32, i32, i32
  }
  func.func @transform_2(%arg0: i32) -> (i32, i32, i32) {
    %c0_i32 = arith.constant 0 : i32
    %c0_i32_0 = arith.constant 0 : i32
    %c0_i32_1 = arith.constant 0 : i32
    %c0_i32_2 = arith.constant 0 : i32
    return %c0_i32, %c0_i32_0, %c0_i32_1 : i32, i32, i32
  }
  func.func @transform_3(%arg0: i32) -> (i32, i32, i32) {
    %c0_i32 = arith.constant 0 : i32
    %c0_i32_0 = arith.constant 0 : i32
    %c0_i32_1 = arith.constant 0 : i32
    %c0_i32_2 = arith.constant 0 : i32
    return %c0_i32, %c0_i32_0, %c0_i32_1 : i32, i32, i32
  }
  func.func @transform_4(%arg0: i32) -> (i32, i32, i32) {
    %c0_i32 = arith.constant 0 : i32
    %c0_i32_0 = arith.constant 0 : i32
    %c0_i32_1 = arith.constant 0 : i32
    %c0_i32_2 = arith.constant 0 : i32
    return %c0_i32, %c0_i32_0, %c0_i32_1 : i32, i32, i32
  }
  func.func @transform_5(%arg0: i32) -> (i32, i32, i32) {
    %c0_i32 = arith.constant 0 : i32
    %c0_i32_0 = arith.constant 0 : i32
    %c0_i32_1 = arith.constant 0 : i32
    %c0_i32_2 = arith.constant 0 : i32
    return %c0_i32, %c0_i32_0, %c0_i32_1 : i32, i32, i32
  }
  func.func @transform_6(%arg0: i32) -> (i32, i32, i32) {
    %c0_i32 = arith.constant 0 : i32
    %c0_i32_0 = arith.constant 0 : i32
    %c0_i32_1 = arith.constant 0 : i32
    %c0_i32_2 = arith.constant 0 : i32
    return %c0_i32, %c0_i32_0, %c0_i32_1 : i32, i32, i32
  }
  func.func @transform_7(%arg0: i32) -> (i32, i32, i32) {
    %c0_i32 = arith.constant 0 : i32
    %c0_i32_0 = arith.constant 0 : i32
    %c0_i32_1 = arith.constant 0 : i32
    return %c0_i32, %arg0, %c0_i32_0 : i32, i32, i32
  }
}

</mosaic_0001>

<llo_original>
// kernel: tpu_custom_call.1
$region0: #{tpu_custom_call.1}
  #allocation0 [shape = 'u32[]', space=smem, size = 0x4, offset = 0x4, fixed_abs, tag = 'smem constant byte address 0x4 - core index']
  #allocation1 [shape = 'u32[144,128]{1,0:T(1,128)}', space=vmem, size = 0x12000, scoped, tag = 'internal scratch']
  %s0 = inlined_call_operand.vmem [shape: f32[8,64], index: 0, kind: input, shape index: {}]
  %s1 = inlined_call_operand.vmem [shape: bf16[2,64,64], index: 1, kind: input, shape index: {}]
  %s2 = inlined_call_operand.vmem [shape: f32[2,1,64], index: 2, kind: input, shape index: {}]
  %s3 = inlined_call_operand.hbm [shape: bf16[2,64,64], index: 3, kind: input, shape index: {}]
  %s4 = inlined_call_operand.vmem [shape: f32[2,1,64], index: 4, kind: input, shape index: {}]
  %s5 = inlined_call_operand.vmem [shape: bf16[2,64,8], index: 5, kind: input, shape index: {}]
  %s6 = inlined_call_operand.vmem [shape: f32[2,1,8], index: 6, kind: input, shape index: {}]
  %s7 = inlined_call_operand.hbm [shape: f32[2,8,8], index: 7, kind: output, shape index: {}]
  %s8 = sld [smem:[#allocation0]]
  $region42: #{tpu_custom_call.1} parent=0
    _
  %s10 = ssub.s32 1, %s8
  %s11 = scalar_select 0, %s10, %s8
  $region1: #{tpu_custom_call.1} parent=0
    #allocation2 [shape = 'u8[32768]{0}', space=vmem, size = 0x8000, scoped, tag = 'input window, operand 3, single buffered']
    #allocation3 [shape = 's32[1]{0}', space=sflag, size = 0x4, scoped, tag = 'scoped memory for tpu_custom_call.1']
    #allocation4 [shape = 's32[1]{0}', space=sflag, size = 0x4, scoped, tag = 'scoped memory for tpu_custom_call.1']
    #allocation5 [shape = 'u8[8192]{0}', space=vmem, size = 0x2000, scoped, tag = 'output window, operand 0, single buffered']
    %12 = vsyncpa [#allocation3], 0
    %13 = vsyncpa [#allocation4], 0
    // Predicated region
    $region2: #{tpu_custom_call.1} parent=1 // pred_check
      _
    $region3: #{tpu_custom_call.1} parent=1 // pred_check_branch
      %15 = sbr.rel (0) target = $region5
    $region4: #{tpu_custom_call.1} parent=1 // pred_region
      _
    $region5: #{tpu_custom_call.1} parent=1 // pred_fallthru
      _
    // Predicated region
    $region6: #{tpu_custom_call.1} parent=1 // pred_check
      _
    $region7: #{tpu_custom_call.1} parent=1 // pred_check_branch
      %17 = sbr.rel (0) target = $region9
    $region8: #{tpu_custom_call.1} parent=1 // pred_region
      _
    $region9: #{tpu_custom_call.1} parent=1 // pred_fallthru
      _
    // Predicated region
    $region10: #{tpu_custom_call.1} parent=1 // pred_check
      _
    $region11: #{tpu_custom_call.1} parent=1 // pred_check_branch
      %19 = sbr.rel (0) target = $region13
    $region12: #{tpu_custom_call.1} parent=1 // pred_region
      _
    $region13: #{tpu_custom_call.1} parent=1 // pred_fallthru
      _
    // Predicated region
    $region14: #{tpu_custom_call.1} parent=1 // pred_check
      _
    $region15: #{tpu_custom_call.1} parent=1 // pred_check_branch
      %21 = sbr.rel (0) target = $region17
    $region16: #{tpu_custom_call.1} parent=1 // pred_region
      %s23 = ssub.s32 1024, 1024
      %24 = vsyncadd [#allocation3], %s23
      %s25 = sshll.u32 [#allocation2], 4
      %s26 = int_to_ptr.vmem [resolvable:$true] %s25
      %31 = dma.hbm_to_vmem [thread:$0]  %s3, 1024, %s26, [#allocation3], 64, 64, 4
    $region17: #{tpu_custom_call.1} parent=1 // pred_fallthru
      _
    // Predicated region
    $region18: #{tpu_custom_call.1} parent=1 // pred_check
      _
    $region19: #{tpu_custom_call.1} parent=1 // pred_check_branch
      %33 = sbr.rel (0) target = $region21
    $region20: #{tpu_custom_call.1} parent=1 // pred_region
      _
    $region21: #{tpu_custom_call.1} parent=1 // pred_fallthru
      _
    // Predicated region
    $region22: #{tpu_custom_call.1} parent=1 // pred_check
      _
    $region23: #{tpu_custom_call.1} parent=1 // pred_check_branch
      %35 = sbr.rel (0) target = $region25
    $region24: #{tpu_custom_call.1} parent=1 // pred_region
      _
    $region25: #{tpu_custom_call.1} parent=1 // pred_fallthru
      _
    // Predicated region
    $region26: #{tpu_custom_call.1} parent=1 // pred_check
      _
    $region27: #{tpu_custom_call.1} parent=1 // pred_check_branch
      %37 = sbr.rel (0) target = $region29
    $region28: #{tpu_custom_call.1} parent=1 // pred_region
      _
    $region29: #{tpu_custom_call.1} parent=1 // pred_fallthru
      _
    // Predicated region
    $region30: #{tpu_custom_call.1} parent=1 // pred_check
      _
    $region31: #{tpu_custom_call.1} parent=1 // pred_check_branch
      %39 = sbr.rel (0) target = $region33
    $region32: #{tpu_custom_call.1} parent=1 // pred_region
      %40 = dma.done [#allocation3], 1024
    $region33: #{tpu_custom_call.1} parent=1 // pred_fallthru
      _
    %v42 = vld [vmem:[%s0] sm:$0xff]
    %v43 = vpack.c.bf16 %v42, %v42
    %v44 = vld [vmem:[%s1] sm:$0xf]
    %v45 = vld [vmem:[%s1 + $0x4] sm:$0xf]
    %v46 = vld [vmem:[%s1 + $0x8] sm:$0xf]
    %v47 = vld [vmem:[%s1 + $0xc] sm:$0xf]
    %v48 = vld [vmem:[%s1 + $0x10] sm:$0xf]
    %v49 = vld [vmem:[%s1 + $0x14] sm:$0xf]
    %v50 = vld [vmem:[%s1 + $0x18] sm:$0xf]
    %v51 = vld [vmem:[%s1 + $0x1c] sm:$0xf]
    %v52 = vld [vmem:[%s2] sm:$0x1]
    %v54 = vlaneseq
    %v55 = vshrl.u32 %v54, 7
    %v56 = vsub.s32 0, %v55
    %v57 = vrot.slane %v52, %v56
    %v67 = vunpack.c.l.b16 %v44
    %v68 = vunpack.c.l.b16 %v45
    %v69 = vunpack.c.l.b16 %v46
    %v70 = vunpack.c.l.b16 %v47
    %v71 = vunpack.c.l.b16 %v48
    %v72 = vunpack.c.l.b16 %v49
    %v73 = vunpack.c.l.b16 %v50
    %v74 = vunpack.c.l.b16 %v51
    %v75 = vpack.c.b16 %v68, %v67
    %v76 = vpack.c.b16 %v70, %v69
    %v77 = vpack.c.b16 %v72, %v71
    %v78 = vpack.c.b16 %v74, %v73
    %vm83 = vcmask 523264
    %v85 = vsel %vm83, %v43, 0
    %87 = vmatprep.subr.bf16.mxu0 0
    %88 = vmatpush1.bf16.msra.mxu0 %v75
    %89 = vmatprep.subr.bf16.mxu0 0
    %90 = vmatpush1.bf16.msra.mxu0 %v76
    %91 = vmatprep.subr.bf16.mxu0 0
    %92 = vmatpush1.bf16.msra.mxu0 %v77
    %93 = vmatprep.subr.bf16.mxu0 0
    %94 = vmatpush1.bf16.msra.mxu0 %v78
    %95 = vmatprep.subr.bf16.mxu0 0
    %96 = vmatpush1.bf16.msra.mxu0 0
    %97 = vmatprep.subr.bf16.mxu0 0
    %98 = vmatpush1.bf16.msra.mxu0 0
    %99 = vmatprep.subr.bf16.mxu0 0
    %100 = vmatpush1.bf16.msra.mxu0 0
    %101 = vmatprep.subr.bf16.mxu0 0
    %102 = vmatpush1.bf16.msra.mxu0 0
    %103 = vmatprep.subr.bf16.mxu0 0
    %104 = vmatpush1.bf16.msra.mxu0 0
    %105 = vmatprep.subr.bf16.mxu0 0
    %106 = vmatpush1.bf16.msra.mxu0 0
    %107 = vmatprep.subr.bf16.mxu0 0
    %108 = vmatpush1.bf16.msra.mxu0 0
    %109 = vmatprep.subr.bf16.mxu0 0
    %110 = vmatpush1.bf16.msra.mxu0 0
    %111 = vmatprep.subr.bf16.mxu0 0
    %112 = vmatpush1.bf16.msra.mxu0 0
    %113 = vmatprep.subr.bf16.mxu0 0
    %114 = vmatpush1.bf16.msra.mxu0 0
    %115 = vmatprep.subr.bf16.mxu0 0
    %116 = vmatpush1.bf16.msra.mxu0 0
    %117 = vmatprep.subr.bf16.mxu0 0
    %118 = vmatpush1.bf16.msra.mxu0 0
    %119 = vmatprep.mubr.bf16.mxu0 0
    %120 = vmatmul.mubr.bf16.gmra.mrb[0].mxu0 %v85
    %v121 = vpop.f32.mrb[0].mxu0
    %v122 = vadd.f32 %v57, %v121
    %v123 = vpop.f32.mrb[0].mxu0
    %v124 = vpop.f32.mrb[0].mxu0
    %v125 = vpop.f32.mrb[0].mxu0
    %126 = vdwg.mxu0
    %v127 = vmax.f32 %v122, 0.0
    %v128 = vpack.c.bf16 %v127, %v127
    %v129 = vld [vmem:[#allocation2] sm:$0xf]
    %v130 = vld [vmem:[#allocation2 + $0x4] sm:$0xf]
    %v131 = vld [vmem:[#allocation2 + $0x8] sm:$0xf]
    %v132 = vld [vmem:[#allocation2 + $0xc] sm:$0xf]
    %v133 = vld [vmem:[#allocation2 + $0x10] sm:$0xf]
    %v134 = vld [vmem:[#allocation2 + $0x14] sm:$0xf]
    %v135 = vld [vmem:[#allocation2 + $0x18] sm:$0xf]
    %v136 = vld [vmem:[#allocation2 + $0x1c] sm:$0xf]
    %v137 = vld [vmem:[%s4] sm:$0x1]
    %v139 = vlaneseq
    %v140 = vshrl.u32 %v139, 7
    %v141 = vsub.s32 0, %v140
    %v142 = vrot.slane %v137, %v141
    %v152 = vunpack.c.l.b16 %v129
    %v153 = vunpack.c.l.b16 %v130
    %v154 = vunpack.c.l.b16 %v131
    %v155 = vunpack.c.l.b16 %v132
    %v156 = vunpack.c.l.b16 %v133
    %v157 = vunpack.c.l.b16 %v134
    %v158 = vunpack.c.l.b16 %v135
    %v159 = vunpack.c.l.b16 %v136
    %v160 = vpack.c.b16 %v153, %v152
    %v161 = vpack.c.b16 %v155, %v154
    %v162 = vpack.c.b16 %v157, %v156
    %v163 = vpack.c.b16 %v159, %v158
    %v169 = vsel %vm83, %v128, 0
    %171 = vmatprep.subr.bf16.mxu0 0
    %172 = vmatpush1.bf16.msra.mxu0 %v160
    %173 = vmatprep.subr.bf16.mxu0 0
    %174 = vmatpush1.bf16.msra.mxu0 %v161
    %175 = vmatprep.subr.bf16.mxu0 0
    %176 = vmatpush1.bf16.msra.mxu0 %v162
    %177 = vmatprep.subr.bf16.mxu0 0
    %178 = vmatpush1.bf16.msra.mxu0 %v163
    %179 = vmatprep.subr.bf16.mxu0 0
    %180 = vmatpush1.bf16.msra.mxu0 0
    %181 = vmatprep.subr.bf16.mxu0 0
    %182 = vmatpush1.bf16.msra.mxu0 0
    %183 = vmatprep.subr.bf16.mxu0 0
    %184 = vmatpush1.bf16.msra.mxu0 0
    %185 = vmatprep.subr.bf16.mxu0 0
    %186 = vmatpush1.bf16.msra.mxu0 0
    %187 = vmatprep.subr.bf16.mxu0 0
    %188 = vmatpush1.bf16.msra.mxu0 0
    %189 = vmatprep.subr.bf16.mxu0 0
    %190 = vmatpush1.bf16.msra.mxu0 0
    %191 = vmatprep.subr.bf16.mxu0 0
    %192 = vmatpush1.bf16.msra.mxu0 0
    %193 = vmatprep.subr.bf16.mxu0 0
    %194 = vmatpush1.bf16.msra.mxu0 0
    %195 = vmatprep.subr.bf16.mxu0 0
    %196 = vmatpush1.bf16.msra.mxu0 0
    %197 = vmatprep.subr.bf16.mxu0 0
    %198 = vmatpush1.bf16.msra.mxu0 0
    %199 = vmatprep.subr.bf16.mxu0 0
    %200 = vmatpush1.bf16.msra.mxu0 0
    %201 = vmatprep.subr.bf16.mxu0 0
    %202 = vmatpush1.bf16.msra.mxu0 0
    %203 = vmatprep.mubr.bf16.mxu0 0
    %204 = vmatmul.mubr.bf16.gmra.mrb[0].mxu0 %v169
    %v205 = vpop.f32.mrb[0].mxu0
    %v206 = vadd.f32 %v142, %v205
    %v207 = vpop.f32.mrb[0].mxu0
    %v208 = vpop.f32.mrb[0].mxu0
    %v209 = vpop.f32.mrb[0].mxu0
    %210 = vdwg.mxu0
    %v211 = vmax.f32 %v206, 0.0
    %v212 = vpack.c.bf16 %v211, %v211
    %v213 = vld [vmem:[%s5] sm:$0xf]
    %v214 = vld [vmem:[%s5 + $0x4] sm:$0xf]
    %v215 = vld [vmem:[%s5 + $0x8] sm:$0xf]
    %v216 = vld [vmem:[%s5 + $0xc] sm:$0xf]
    %v217 = vld [vmem:[%s5 + $0x10] sm:$0xf]
    %v218 = vld [vmem:[%s5 + $0x14] sm:$0xf]
    %v219 = vld [vmem:[%s5 + $0x18] sm:$0xf]
    %v220 = vld [vmem:[%s5 + $0x1c] sm:$0xf]
    %v221 = vld [vmem:[%s6] sm:$0x1]
    %v223 = vlaneseq
    %v224 = vshrl.u32 %v223, 7
    %v225 = vsub.s32 0, %v224
    %v226 = vrot.slane %v221, %v225
    %v236 = vunpack.c.l.b16 %v213
    %v237 = vunpack.c.l.b16 %v214
    %v238 = vunpack.c.l.b16 %v215
    %v239 = vunpack.c.l.b16 %v216
    %v240 = vunpack.c.l.b16 %v217
    %v241 = vunpack.c.l.b16 %v218
    %v242 = vunpack.c.l.b16 %v219
    %v243 = vunpack.c.l.b16 %v220
    %v244 = vpack.c.b16 %v237, %v236
    %v245 = vpack.c.b16 %v239, %v238
    %v246 = vpack.c.b16 %v241, %v240
    %v247 = vpack.c.b16 %v243, %v242
    %v253 = vsel %vm83, %v212, 0
    %255 = vmatprep.subr.bf16.mxu0 0
    %256 = vmatpush1.bf16.msra.mxu0 %v244
    %257 = vmatprep.subr.bf16.mxu0 0
    %258 = vmatpush1.bf16.msra.mxu0 %v245
    %259 = vmatprep.subr.bf16.mxu0 0
    %260 = vmatpush1.bf16.msra.mxu0 %v246
    %261 = vmatprep.subr.bf16.mxu0 0
    %262 = vmatpush1.bf16.msra.mxu0 %v247
    %263 = vmatprep.subr.bf16.mxu0 0
    %264 = vmatpush1.bf16.msra.mxu0 0
    %265 = vmatprep.subr.bf16.mxu0 0
    %266 = vmatpush1.bf16.msra.mxu0 0
    %267 = vmatprep.subr.bf16.mxu0 0
    %268 = vmatpush1.bf16.msra.mxu0 0
    %269 = vmatprep.subr.bf16.mxu0 0
    %270 = vmatpush1.bf16.msra.mxu0 0
    %271 = vmatprep.subr.bf16.mxu0 0
    %272 = vmatpush1.bf16.msra.mxu0 0
    %273 = vmatprep.subr.bf16.mxu0 0
    %274 = vmatpush1.bf16.msra.mxu0 0
    %275 = vmatprep.subr.bf16.mxu0 0
    %276 = vmatpush1.bf16.msra.mxu0 0
    %277 = vmatprep.subr.bf16.mxu0 0
    %278 = vmatpush1.bf16.msra.mxu0 0
    %279 = vmatprep.subr.bf16.mxu0 0
    %280 = vmatpush1.bf16.msra.mxu0 0
    %281 = vmatprep.subr.bf16.mxu0 0
    %282 = vmatpush1.bf16.msra.mxu0 0
    %283 = vmatprep.subr.bf16.mxu0 0
    %284 = vmatpush1.bf16.msra.mxu0 0
    %285 = vmatprep.subr.bf16.mxu0 0
    %286 = vmatpush1.bf16.msra.mxu0 0
    %287 = vmatprep.mubr.bf16.mxu0 0
    %288 = vmatmul.mubr.bf16.gmra.mrb[0].mxu0 %v253
    %v289 = vpop.f32.mrb[0].mxu0
    %v290 = vadd.f32 %v226, %v289
    %v291 = vpop.f32.mrb[0].mxu0
    %v292 = vpop.f32.mrb[0].mxu0
    %v293 = vpop.f32.mrb[0].mxu0
    %294 = vdwg.mxu0
    %v295 = vtanh.pop %v290
    %vm296 = vcmask 64512
    %297 = vst.msk [vmem:[#allocation5] sm:$0xff] %vm296, %v295
    %s298 = scalar_lea.vmem %s1, 32
    %v299 = vld [vmem:[%s298] sm:$0xf]
    %v300 = vld [vmem:[%s298 + $0x4] sm:$0xf]
    %v301 = vld [vmem:[%s298 + $0x8] sm:$0xf]
    %v302 = vld [vmem:[%s298 + $0xc] sm:$0xf]
    %v303 = vld [vmem:[%s298 + $0x10] sm:$0xf]
    %v304 = vld [vmem:[%s298 + $0x14] sm:$0xf]
    %v305 = vld [vmem:[%s298 + $0x18] sm:$0xf]
    %v306 = vld [vmem:[%s298 + $0x1c] sm:$0xf]
    %s307 = scalar_lea.vmem %s2, 1
    %v308 = vld [vmem:[%s307] sm:$0x1]
    %v310 = vlaneseq
    %v311 = vshrl.u32 %v310, 7
    %v312 = vsub.s32 0, %v311
    %v313 = vrot.slane %v308, %v312
    %v323 = vunpack.c.l.b16 %v299
    %v324 = vunpack.c.l.b16 %v300
    %v325 = vunpack.c.l.b16 %v301
    %v326 = vunpack.c.l.b16 %v302
    %v327 = vunpack.c.l.b16 %v303
    %v328 = vunpack.c.l.b16 %v304
    %v329 = vunpack.c.l.b16 %v305
    %v330 = vunpack.c.l.b16 %v306
    %v331 = vpack.c.b16 %v324, %v323
    %v332 = vpack.c.b16 %v326, %v325
    %v333 = vpack.c.b16 %v328, %v327
    %v334 = vpack.c.b16 %v330, %v329
    %339 = vmatprep.subr.bf16.mxu0 0
    %340 = vmatpush1.bf16.msra.mxu0 %v331
    %341 = vmatprep.subr.bf16.mxu0 0
    %342 = vmatpush1.bf16.msra.mxu0 %v332
    %343 = vmatprep.subr.bf16.mxu0 0
    %344 = vmatpush1.bf16.msra.mxu0 %v333
    %345 = vmatprep.subr.bf16.mxu0 0
    %346 = vmatpush1.bf16.msra.mxu0 %v334
    %347 = vmatprep.subr.bf16.mxu0 0
    %348 = vmatpush1.bf16.msra.mxu0 0
    %349 = vmatprep.subr.bf16.mxu0 0
    %350 = vmatpush1.bf16.msra.mxu0 0
    %351 = vmatprep.subr.bf16.mxu0 0
    %352 = vmatpush1.bf16.msra.mxu0 0
    %353 = vmatprep.subr.bf16.mxu0 0
    %354 = vmatpush1.bf16.msra.mxu0 0
    %355 = vmatprep.subr.bf16.mxu0 0
    %356 = vmatpush1.bf16.msra.mxu0 0
    %357 = vmatprep.subr.bf16.mxu0 0
    %358 = vmatpush1.bf16.msra.mxu0 0
    %359 = vmatprep.subr.bf16.mxu0 0
    %360 = vmatpush1.bf16.msra.mxu0 0
    %361 = vmatprep.subr.bf16.mxu0 0
    %362 = vmatpush1.bf16.msra.mxu0 0
    %363 = vmatprep.subr.bf16.mxu0 0
    %364 = vmatpush1.bf16.msra.mxu0 0
    %365 = vmatprep.subr.bf16.mxu0 0
    %366 = vmatpush1.bf16.msra.mxu0 0
    %367 = vmatprep.subr.bf16.mxu0 0
    %368 = vmatpush1.bf16.msra.mxu0 0
    %369 = vmatprep.subr.bf16.mxu0 0
    %370 = vmatpush1.bf16.msra.mxu0 0
    %371 = vmatprep.mubr.bf16.mxu0 0
    %372 = vmatmul.mubr.bf16.gmra.mrb[0].mxu0 %v85
    %v373 = vpop.f32.mrb[0].mxu0
    %v374 = vadd.f32 %v313, %v373
    %v375 = vpop.f32.mrb[0].mxu0
    %v376 = vpop.f32.mrb[0].mxu0
    %v377 = vpop.f32.mrb[0].mxu0
    %378 = vdwg.mxu0
    %v379 = vmax.f32 %v374, 0.0
    %v380 = vpack.c.bf16 %v379, %v379
    %s381 = scalar_lea.vmem [#allocation2], 32
    %v382 = vld [vmem:[%s381] sm:$0xf]
    %v383 = vld [vmem:[%s381 + $0x4] sm:$0xf]
    %v384 = vld [vmem:[%s381 + $0x8] sm:$0xf]
    %v385 = vld [vmem:[%s381 + $0xc] sm:$0xf]
    %v386 = vld [vmem:[%s381 + $0x10] sm:$0xf]
    %v387 = vld [vmem:[%s381 + $0x14] sm:$0xf]
    %v388 = vld [vmem:[%s381 + $0x18] sm:$0xf]
    %v389 = vld [vmem:[%s381 + $0x1c] sm:$0xf]
    %s390 = scalar_lea.vmem %s4, 1
    %v391 = vld [vmem:[%s390] sm:$0x1]
    %v393 = vlaneseq
    %v394 = vshrl.u32 %v393, 7
    %v395 = vsub.s32 0, %v394
    %v396 = vrot.slane %v391, %v395
    %v406 = vunpack.c.l.b16 %v382
    %v407 = vunpack.c.l.b16 %v383
    %v408 = vunpack.c.l.b16 %v384
    %v409 = vunpack.c.l.b16 %v385
    %v410 = vunpack.c.l.b16 %v386
    %v411 = vunpack.c.l.b16 %v387
    %v412 = vunpack.c.l.b16 %v388
    %v413 = vunpack.c.l.b16 %v389
    %v414 = vpack.c.b16 %v407, %v406
    %v415 = vpack.c.b16 %v409, %v408
    %v416 = vpack.c.b16 %v411, %v410
    %v417 = vpack.c.b16 %v413, %v412
    %v423 = vsel %vm83, %v380, 0
    %425 = vmatprep.subr.bf16.mxu0 0
    %426 = vmatpush1.bf16.msra.mxu0 %v414
    %427 = vmatprep.subr.bf16.mxu0 0
    %428 = vmatpush1.bf16.msra.mxu0 %v415
    %429 = vmatprep.subr.bf16.mxu0 0
    %430 = vmatpush1.bf16.msra.mxu0 %v416
    %431 = vmatprep.subr.bf16.mxu0 0
    %432 = vmatpush1.bf16.msra.mxu0 %v417
    %433 = vmatprep.subr.bf16.mxu0 0
    %434 = vmatpush1.bf16.msra.mxu0 0
    %435 = vmatprep.subr.bf16.mxu0 0
    %436 = vmatpush1.bf16.msra.mxu0 0
    %437 = vmatprep.subr.bf16.mxu0 0
    %438 = vmatpush1.bf16.msra.mxu0 0
    %439 = vmatprep.subr.bf16.mxu0 0
    %440 = vmatpush1.bf16.msra.mxu0 0
    %441 = vmatprep.subr.bf16.mxu0 0
    %442 = vmatpush1.bf16.msra.mxu0 0
    %443 = vmatprep.subr.bf16.mxu0 0
    %444 = vmatpush1.bf16.msra.mxu0 0
    %445 = vmatprep.subr.bf16.mxu0 0
    %446 = vmatpush1.bf16.msra.mxu0 0
    %447 = vmatprep.subr.bf16.mxu0 0
    %448 = vmatpush1.bf16.msra.mxu0 0
    %449 = vmatprep.subr.bf16.mxu0 0
    %450 = vmatpush1.bf16.msra.mxu0 0
    %451 = vmatprep.subr.bf16.mxu0 0
    %452 = vmatpush1.bf16.msra.mxu0 0
    %453 = vmatprep.subr.bf16.mxu0 0
    %454 = vmatpush1.bf16.msra.mxu0 0
    %455 = vmatprep.subr.bf16.mxu0 0
    %456 = vmatpush1.bf16.msra.mxu0 0
    %457 = vmatprep.mubr.bf16.mxu0 0
    %458 = vmatmul.mubr.bf16.gmra.mrb[0].mxu0 %v423
    %v459 = vpop.f32.mrb[0].mxu0
    %v460 = vadd.f32 %v396, %v459
    %v461 = vpop.f32.mrb[0].mxu0
    %v462 = vpop.f32.mrb[0].mxu0
    %v463 = vpop.f32.mrb[0].mxu0
    %464 = vdwg.mxu0
    %v465 = vmax.f32 %v460, 0.0
    %v466 = vpack.c.bf16 %v465, %v465
    %s467 = scalar_lea.vmem %s5, 32
    %v468 = vld [vmem:[%s467] sm:$0xf]
    %v469 = vld [vmem:[%s467 + $0x4] sm:$0xf]
    %v470 = vld [vmem:[%s467 + $0x8] sm:$0xf]
    %v471 = vld [vmem:[%s467 + $0xc] sm:$0xf]
    %v472 = vld [vmem:[%s467 + $0x10] sm:$0xf]
    %v473 = vld [vmem:[%s467 + $0x14] sm:$0xf]
    %v474 = vld [vmem:[%s467 + $0x18] sm:$0xf]
    %v475 = vld [vmem:[%s467 + $0x1c] sm:$0xf]
    %s476 = scalar_lea.vmem %s6, 1
    %v477 = vld [vmem:[%s476] sm:$0x1]
    %v479 = vlaneseq
    %v480 = vshrl.u32 %v479, 7
    %v481 = vsub.s32 0, %v480
    %v482 = vrot.slane %v477, %v481
    %v492 = vunpack.c.l.b16 %v468
    %v493 = vunpack.c.l.b16 %v469
    %v494 = vunpack.c.l.b16 %v470
    %v495 = vunpack.c.l.b16 %v471
    %v496 = vunpack.c.l.b16 %v472
    %v497 = vunpack.c.l.b16 %v473
    %v498 = vunpack.c.l.b16 %v474
    %v499 = vunpack.c.l.b16 %v475
    %v500 = vpack.c.b16 %v493, %v492
    %v501 = vpack.c.b16 %v495, %v494
    %v502 = vpack.c.b16 %v497, %v496
    %v503 = vpack.c.b16 %v499, %v498
    %v509 = vsel %vm83, %v466, 0
    %511 = vmatprep.subr.bf16.mxu0 0
    %512 = vmatpush1.bf16.msra.mxu0 %v500
    %513 = vmatprep.subr.bf16.mxu0 0
    %514 = vmatpush1.bf16.msra.mxu0 %v501
    %515 = vmatprep.subr.bf16.mxu0 0
    %516 = vmatpush1.bf16.msra.mxu0 %v502
    %517 = vmatprep.subr.bf16.mxu0 0
    %518 = vmatpush1.bf16.msra.mxu0 %v503
    %519 = vmatprep.subr.bf16.mxu0 0
    %520 = vmatpush1.bf16.msra.mxu0 0
    %521 = vmatprep.subr.bf16.mxu0 0
    %522 = vmatpush1.bf16.msra.mxu0 0
    %523 = vmatprep.subr.bf16.mxu0 0
    %524 = vmatpush1.bf16.msra.mxu0 0
    %525 = vmatprep.subr.bf16.mxu0 0
    %526 = vmatpush1.bf16.msra.mxu0 0
    %527 = vmatprep.subr.bf16.mxu0 0
    %528 = vmatpush1.bf16.msra.mxu0 0
    %529 = vmatprep.subr.bf16.mxu0 0
    %530 = vmatpush1.bf16.msra.mxu0 0
    %531 = vmatprep.subr.bf16.mxu0 0
    %532 = vmatpush1.bf16.msra.mxu0 0
    %533 = vmatprep.subr.bf16.mxu0 0
    %534 = vmatpush1.bf16.msra.mxu0 0
    %535 = vmatprep.subr.bf16.mxu0 0
    %536 = vmatpush1.bf16.msra.mxu0 0
    %537 = vmatprep.subr.bf16.mxu0 0
    %538 = vmatpush1.bf16.msra.mxu0 0
    %539 = vmatprep.subr.bf16.mxu0 0
    %540 = vmatpush1.bf16.msra.mxu0 0
    %541 = vmatprep.subr.bf16.mxu0 0
    %542 = vmatpush1.bf16.msra.mxu0 0
    %543 = vmatprep.mubr.bf16.mxu0 0
    %544 = vmatmul.mubr.bf16.gmra.mrb[0].mxu0 %v509
    %v545 = vpop.f32.mrb[0].mxu0
    %v546 = vadd.f32 %v482, %v545
    %v547 = vpop.f32.mrb[0].mxu0
    %v548 = vpop.f32.mrb[0].mxu0
    %v549 = vpop.f32.mrb[0].mxu0
    %550 = vdwg.mxu0
    %v551 = vtanh.pop %v546
    %s552 = scalar_lea.vmem [#allocation5], 8
    %553 = vst.msk [vmem:[%s552] sm:$0xff] %vm296, %v551
    // Predicated region
    $region34: #{tpu_custom_call.1} parent=1 // pred_check
      _
    $region35: #{tpu_custom_call.1} parent=1 // pred_check_branch
      %555 = sbr.rel (0) target = $region37
    $region36: #{tpu_custom_call.1} parent=1 // pred_region
      %s557 = ssub.s32 256, 256
      %558 = vsyncadd [#allocation4], %s557
      %s559 = sshll.u32 [#allocation5], 4
      %s560 = int_to_ptr.vmem [resolvable:$true] %s559
      %565 = dma.vmem_to_hbm [thread:$0]  %s560, 256, %s7, [#allocation4], 128, 128, 8
    $region37: #{tpu_custom_call.1} parent=1 // pred_fallthru
      _
    // Predicated region
    $region38: #{tpu_custom_call.1} parent=1 // pred_check
      _
    $region39: #{tpu_custom_call.1} parent=1 // pred_check_branch
      %567 = sbr.rel (0) target = $region41
    $region40: #{tpu_custom_call.1} parent=1 // pred_region
      %568 = dma.done [#allocation4], 256
    $region41: #{tpu_custom_call.1} parent=1 // pred_fallthru
      _
    %569 = vsyncpa [#allocation3], 1
    %570 = vsyncpa [#allocation4], 1

</llo_original>
